<compile_context>
chip_gen: v6e
topology: v6e:2x2x1
jax: 0.10.0
libtpu: 0.0.40
codegen_flags: <defaults>
</compile_context>

<pallas_src>
import functools

import jax
import jax.numpy as jnp
from jax import lax
from jax.experimental import pallas as pl
from jax.experimental.pallas import tpu as pltpu


def _lrelu(x, slope=0.2):
    return jnp.where(x > 0, x, slope * x)


# ----------------------------- stage 1: BN batch statistics -----------------------------
def stats_kernel(x_ref, w1_ref, b1_ref, w2_ref, sum_ref, sq_ref, *, hw, tp, masked):
    n = pl.program_id(0)
    i = pl.program_id(1)

    x = x_ref[...].astype(jnp.bfloat16)                                   # (C, tp)
    h1 = jnp.dot(w1_ref[...], x, preferred_element_type=jnp.float32) + b1_ref[...]
    h1 = _lrelu(h1)                                                       # (ndf, tp)  f32
    h2 = jnp.dot(w2_ref[...], h1.astype(jnp.bfloat16),
                 preferred_element_type=jnp.float32)                      # (2*ndf, tp) f32

    if masked:  # zero out padded pixels so they don't pollute the batch statistics
        lane = lax.broadcasted_iota(jnp.int32, (1, tp), 1)
        h2 = jnp.where(i * tp + lane < hw, h2, 0.0)

    @pl.when(jnp.logical_and(n == 0, i == 0))
    def _():
        sum_ref[...] = jnp.zeros_like(sum_ref)
        sq_ref[...] = jnp.zeros_like(sq_ref)

    sum_ref[...] += jnp.sum(h2, axis=-1, keepdims=True)                   # (2*ndf, 1)
    sq_ref[...] += jnp.sum(h2 * h2, axis=-1, keepdims=True)               # (2*ndf, 1)


# ---- stage 2: conv1+lrelu+conv2 (recomputed, BN scale folded into w2) + shift + lrelu + conv3 ----
def fwd_kernel(x_ref, w1_ref, b1_ref, w2s_ref, shift_ref, w3_ref, out_ref):
    x = x_ref[...].astype(jnp.bfloat16)                                   # (C, tp)
    h1 = jnp.dot(w1_ref[...], x, preferred_element_type=jnp.float32) + b1_ref[...]
    h1 = _lrelu(h1)                                                       # (ndf, tp)
    h2 = jnp.dot(w2s_ref[...], h1.astype(jnp.bfloat16),
                 preferred_element_type=jnp.float32)                      # scale already folded in
    hn = _lrelu(h2 + shift_ref[...])                                      # BN shift + LeakyReLU
    # Final 2*ndf -> 1 projection as VPU multiply + sublane reduce: lane-dense (1, tp) output.
    out_ref[...] = jnp.sum(hn * w3_ref[...], axis=0, keepdims=True)       # (1, tp)


def _round_up(x, m):
    return -(-x // m) * m


def _pick_tp(hw, cap=4096):
    """Pixel tile: multiple of 128, <= cap, covering hw (hw is padded up to a multiple of it)."""
    if hw <= cap:
        return _round_up(hw, 128)
    return cap


def pixel_discriminator(x_nchw, params):
    N, C, H, W = x_nchw.shape
    HW = H * W
    tp = _pick_tp(HW)
    HW_pad = _round_up(HW, tp)
    G = HW_pad // tp
    masked = HW_pad != HW

    # Free reshape (no transpose, no HBM round trip): (N, C, H*W).
    x = x_nchw.reshape(N, C, HW).astype(jnp.float32)
    if masked:
        x = jnp.pad(x, ((0, 0), (0, 0), (0, HW_pad - HW)))

    w1 = params["w1"]
    b1 = params["b1"]
    w2 = params["w2"]
    gamma = params["gamma"]
    beta = params["beta"]
    w3 = params["w3"]
    ndf = w1.shape[0]
    ndf2 = w2.shape[0]

    # bf16 MXU operands; accumulation is requested in f32 inside the kernels.
    w1m = w1.reshape(ndf, C).astype(jnp.bfloat16)         # (ndf, C)      bf16
    b1c = b1.reshape(ndf, 1).astype(jnp.float32)          # (ndf, 1)      f32
    w2m_f32 = w2.reshape(ndf2, ndf).astype(jnp.float32)   # (2*ndf, ndf)  f32 master copy
    w2m = w2m_f32.astype(jnp.bfloat16)                    # bf16 for stage 1
    w3c = w3.reshape(ndf2, 1).astype(jnp.float32)         # (2*ndf, 1)    f32

    x_spec = pl.BlockSpec((None, C, tp), lambda n, i: (n, 0, i))  # squeezed batch dim
    w1_spec = pl.BlockSpec((ndf, C), lambda n, i: (0, 0))
    b1_spec = pl.BlockSpec((ndf, 1), lambda n, i: (0, 0))
    w2_spec = pl.BlockSpec((ndf2, ndf), lambda n, i: (0, 0))
    col_spec = pl.BlockSpec((ndf2, 1), lambda n, i: (0, 0))

    # ---- stage 1: per-channel sum / sumsq of conv2 output (h2 never written to HBM) ----
    sum_c, sq_c = pl.pallas_call(
        functools.partial(stats_kernel, hw=HW, tp=tp, masked=masked),
        out_shape=(jax.ShapeDtypeStruct((ndf2, 1), jnp.float32),
                   jax.ShapeDtypeStruct((ndf2, 1), jnp.float32)),
        grid_spec=pltpu.PrefetchScalarGridSpec(
            num_scalar_prefetch=0, grid=(N, G),
            in_specs=[x_spec, w1_spec, b1_spec, w2_spec],
            out_specs=[col_spec, col_spec]),
        compiler_params=pltpu.CompilerParams(
            dimension_semantics=("arbitrary", "arbitrary")),   # grid-resident accumulators
    )(x, w1m, b1c, w2m)

    # BatchNorm2d (training mode: biased batch statistics over N*H*W real pixels per channel).
    count = jnp.float32(N * HW)
    mean = sum_c / count                                        # (2*ndf, 1)
    var = jnp.maximum(sq_c / count - mean * mean, 0.0)          # clamp f32 cancellation
    eps = 1e-5
    scale = gamma.reshape(ndf2, 1).astype(jnp.float32) / jnp.sqrt(var + eps)
    shift = beta.reshape(ndf2, 1).astype(jnp.float32) - mean * scale

    # Fold BN scale into conv2 weights for stage 2 (removes a (2*ndf, tp) VPU multiply per tile).
    w2s = (scale * w2m_f32).astype(jnp.bfloat16)

    # ---- stage 2: fused conv1 + lrelu + (scaled conv2) + shift + lrelu + conv3 ----
    out_row = pl.pallas_call(
        fwd_kernel,
        out_shape=jax.ShapeDtypeStruct((N, 1, HW_pad), jnp.float32),
        grid_spec=pltpu.PrefetchScalarGridSpec(
            num_scalar_prefetch=0, grid=(N, G),
            in_specs=[x_spec, w1_spec, b1_spec, w2_spec, col_spec, col_spec],
            out_specs=pl.BlockSpec((None, 1, tp), lambda n, i: (n, 0, i))),
        compiler_params=pltpu.CompilerParams(
            dimension_semantics=("parallel", "parallel")),     # independent pixel tiles
    )(x, w1m, b1c, w2s, shift, w3c)

    return out_row[:, :, :HW].reshape(N, 1, H, W)              # NCHW, 1 output channel


def reference_forward(x_nchw, params):
    # Pure-JAX f32 reference with the PyTorch module's semantics (for verification).
    N, C, H, W = x_nchw.shape
    x = jnp.transpose(x_nchw, (0, 2, 3, 1)).reshape(-1, C).astype(jnp.float32)
    w1, b1, w2, gamma, beta, w3 = (params[k] for k in ("w1", "b1", "w2", "gamma", "beta", "w3"))
    ndf, ndf2 = w1.shape[0], w2.shape[0]
    h1 = _lrelu(x @ w1.reshape(ndf, C).T + b1.reshape(1, ndf))
    h2 = h1 @ w2.reshape(ndf2, ndf).T
    mean = jnp.mean(h2, axis=0)
    var = jnp.mean(h2 * h2, axis=0) - mean * mean
    hn = _lrelu((h2 - mean) / jnp.sqrt(var + 1e-5) * gamma + beta)
    out = hn @ w3.reshape(1, ndf2).T
    return out.reshape(N, H, W, 1).transpose(0, 3, 1, 2)


def init_params(key, input_nc, ndf=64):
    ks = jax.random.split(key, 4)
    ndf2 = ndf * 2
    return {
        "w1": jax.random.normal(ks[0], (ndf, input_nc, 1, 1), jnp.float32) * 0.1,
        "b1": jax.random.normal(ks[1], (ndf,), jnp.float32) * 0.1,
        "w2": jax.random.normal(ks[2], (ndf2, ndf, 1, 1), jnp.float32) * 0.05,
        "gamma": jnp.ones((ndf2,), jnp.float32),     # BatchNorm2d default init
        "beta": jnp.zeros((ndf2,), jnp.float32),
        "w3": jax.random.normal(ks[3], (1, ndf2, 1, 1), jnp.float32) * 0.05,
    }


if __name__ == "__main__":
    key = jax.random.PRNGKey(0)
    k_x, k_p = jax.random.split(key)

    N, C, H, W = 2, 4, 16, 16       # input_nc = 4
    x = jax.random.normal(k_x, (N, C, H, W), jnp.float32)
    params = init_params(k_p, input_nc=C, ndf=64)

    out = jax.block_until_ready(pixel_discriminator(x, params))
    ref = jax.block_until_ready(reference_forward(x, params))

    assert out.shape == (N, 1, H, W), out.shape
    # bf16 MXU operands (f32 accumulation) vs an all-f32 reference: expected ~1e-3..1e-2 error.
    assert jnp.allclose(out, ref, rtol=5e-2, atol=5e-2), float(jnp.max(jnp.abs(out - ref)))

    print("KERNEL_OK")
</pallas_src>

<mosaic_0001>
module attributes {stable_mosaic.version = 11 : i64} {
  func.func @stats_kernel(%arg0: i32, %arg1: i32, %arg2: memref<1x4x256xf32, #tpu.memory_space<vmem>>, %arg3: memref<64x4xbf16, #tpu.memory_space<vmem>>, %arg4: memref<64x1xf32, #tpu.memory_space<vmem>>, %arg5: memref<128x64xbf16, #tpu.memory_space<vmem>>, %arg6: memref<128x1xf32, #tpu.memory_space<vmem>>, %arg7: memref<128x1xf32, #tpu.memory_space<vmem>>) attributes {dimension_semantics = [#tpu.dimension_semantics<arbitrary>, #tpu.dimension_semantics<arbitrary>], iteration_bounds = array<i64: 2, 1>, scalar_prefetch = 0 : i64, scratch_operands = 0 : i64, tpu.core_type = #tpu.core_type<tc>, window_params = [{transform_indices = @transform_0, window_bounds = array<i64: 1, 4, 256>}, {pipeline_mode = #tpu.pipeline_mode<synchronous>, transform_indices = @transform_1, window_bounds = array<i64: 64, 4>}, {pipeline_mode = #tpu.pipeline_mode<synchronous>, transform_indices = @transform_2, window_bounds = array<i64: 64, 1>}, {pipeline_mode = #tpu.pipeline_mode<synchronous>, transform_indices = @transform_3, window_bounds = array<i64: 128, 64>}, {pipeline_mode = #tpu.pipeline_mode<synchronous>, transform_indices = @transform_4, window_bounds = array<i64: 128, 1>}, {pipeline_mode = #tpu.pipeline_mode<synchronous>, transform_indices = @transform_5, window_bounds = array<i64: 128, 1>}]} {
    %c0 = arith.constant 0 : index
    %c0_0 = arith.constant 0 : index
    %c0_1 = arith.constant 0 : index
    %0 = vector.load %arg2[%c0, %c0_0, %c0_1] : memref<1x4x256xf32, #tpu.memory_space<vmem>>, vector<1x4x256xf32>
    %1 = vector.shape_cast %0 : vector<1x4x256xf32> to vector<4x256xf32>
    %2 = arith.truncf %1 : vector<4x256xf32> to vector<4x256xbf16>
    %c0_2 = arith.constant 0 : index
    %c0_3 = arith.constant 0 : index
    %3 = vector.load %arg3[%c0_2, %c0_3] : memref<64x4xbf16, #tpu.memory_space<vmem>>, vector<64x4xbf16>
    %cst = arith.constant dense<0.000000e+00> : vector<64x256xf32>
    %4 = tpu.matmul %3, %2, %cst {dimension_numbers = #tpu.dot_dimension_numbers<[1], [0], [0], [1], [0, 0, 1, 1], [], []>} : vector<64x4xbf16>, vector<4x256xbf16>, vector<64x256xf32> -> vector<64x256xf32>
    %c0_4 = arith.constant 0 : index
    %c0_5 = arith.constant 0 : index
    %5 = vector.load %arg4[%c0_4, %c0_5] : memref<64x1xf32, #tpu.memory_space<vmem>>, vector<64x1xf32>
    %6 = vector.broadcast %5 : vector<64x1xf32> to vector<64x256xf32>
    %7 = arith.addf %4, %6 : vector<64x256xf32>
    %cst_6 = arith.constant 0.000000e+00 : f32
    %8 = vector.broadcast %cst_6 : f32 to vector<64x256xf32>
    %9 = arith.cmpf ogt, %7, %8 : vector<64x256xf32>
    %cst_7 = arith.constant 2.000000e-01 : f32
    %10 = vector.broadcast %cst_7 : f32 to vector<64x256xf32>
    %11 = arith.mulf %10, %7 : vector<64x256xf32>
    %12 = arith.select %9, %7, %11 : vector<64x256xi1>, vector<64x256xf32>
    %c0_8 = arith.constant 0 : index
    %c0_9 = arith.constant 0 : index
    %13 = vector.load %arg5[%c0_8, %c0_9] : memref<128x64xbf16, #tpu.memory_space<vmem>>, vector<128x64xbf16>
    %14 = arith.truncf %12 : vector<64x256xf32> to vector<64x256xbf16>
    %cst_10 = arith.constant dense<0.000000e+00> : vector<128x256xf32>
    %15 = tpu.matmul %13, %14, %cst_10 {dimension_numbers = #tpu.dot_dimension_numbers<[1], [0], [0], [1], [0, 0, 1, 1], [], []>} : vector<128x64xbf16>, vector<64x256xbf16>, vector<128x256xf32> -> vector<128x256xf32>
    %c0_i32 = arith.constant 0 : i32
    %16 = arith.cmpi eq, %arg0, %c0_i32 : i32
    %c0_i32_11 = arith.constant 0 : i32
    %17 = arith.cmpi eq, %arg1, %c0_i32_11 : i32
    %18 = arith.andi %16, %17 : i1
    %19 = arith.extui %18 : i1 to i32
    %c0_i32_12 = arith.constant 0 : i32
    %20 = arith.cmpi ne, %19, %c0_i32_12 : i32
    scf.if %20 {
      %cst_23 = arith.constant 0.000000e+00 : f32
      %32 = vector.broadcast %cst_23 : f32 to vector<128x1xf32>
      %c0_24 = arith.constant 0 : index
      %c0_25 = arith.constant 0 : index
      %33 = vector.load %arg6[%c0_24, %c0_25] : memref<128x1xf32, #tpu.memory_space<vmem>>, vector<128x1xf32>
      tpu.vector_store %arg6[%c0_24, %c0_25], %32 {strides = array<i32>} : memref<128x1xf32, #tpu.memory_space<vmem>>, vector<128x1xf32>,
      %cst_26 = arith.constant 0.000000e+00 : f32
      %34 = vector.broadcast %cst_26 : f32 to vector<128x1xf32>
      %c0_27 = arith.constant 0 : index
      %c0_28 = arith.constant 0 : index
      %35 = vector.load %arg7[%c0_27, %c0_28] : memref<128x1xf32, #tpu.memory_space<vmem>>, vector<128x1xf32>
      tpu.vector_store %arg7[%c0_27, %c0_28], %34 {strides = array<i32>} : memref<128x1xf32, #tpu.memory_space<vmem>>, vector<128x1xf32>,
    } else {
    }
    %c0_13 = arith.constant 0 : index
    %c0_14 = arith.constant 0 : index
    %21 = vector.load %arg6[%c0_13, %c0_14] : memref<128x1xf32, #tpu.memory_space<vmem>>, vector<128x1xf32>
    %cst_15 = arith.constant dense<0.000000e+00> : vector<128xf32>
    %22 = vector.multi_reduction <add>, %15, %cst_15 [1] : vector<128x256xf32> to vector<128xf32>
    %23 = vector.shape_cast %22 : vector<128xf32> to vector<128x1xf32>
    %24 = arith.addf %21, %23 : vector<128x1xf32>
    %c0_16 = arith.constant 0 : index
    %c0_17 = arith.constant 0 : index
    %25 = vector.load %arg6[%c0_16, %c0_17] : memref<128x1xf32, #tpu.memory_space<vmem>>, vector<128x1xf32>
    tpu.vector_store %arg6[%c0_16, %c0_17], %24 {strides = array<i32>} : memref<128x1xf32, #tpu.memory_space<vmem>>, vector<128x1xf32>,
    %c0_18 = arith.constant 0 : index
    %c0_19 = arith.constant 0 : index
    %26 = vector.load %arg7[%c0_18, %c0_19] : memref<128x1xf32, #tpu.memory_space<vmem>>, vector<128x1xf32>
    %27 = arith.mulf %15, %15 : vector<128x256xf32>
    %cst_20 = arith.constant dense<0.000000e+00> : vector<128xf32>
    %28 = vector.multi_reduction <add>, %27, %cst_20 [1] : vector<128x256xf32> to vector<128xf32>
    %29 = vector.shape_cast %28 : vector<128xf32> to vector<128x1xf32>
    %30 = arith.addf %26, %29 : vector<128x1xf32>
    %c0_21 = arith.constant 0 : index
    %c0_22 = arith.constant 0 : index
    %31 = vector.load %arg7[%c0_21, %c0_22] : memref<128x1xf32, #tpu.memory_space<vmem>>, vector<128x1xf32>
    tpu.vector_store %arg7[%c0_21, %c0_22], %30 {strides = array<i32>} : memref<128x1xf32, #tpu.memory_space<vmem>>, vector<128x1xf32>,
    return
  }
  func.func @transform_0(%arg0: i32, %arg1: i32) -> (i32, i32, i32) {
    %c0_i32 = arith.constant 0 : i32
    %c0_i32_0 = arith.constant 0 : i32
    return %arg0, %c0_i32, %arg1 : i32, i32, i32
  }
  func.func @transform_1(%arg0: i32, %arg1: i32) -> (i32, i32) {
    %c0_i32 = arith.constant 0 : i32
    %c0_i32_0 = arith.constant 0 : i32
    %c0_i32_1 = arith.constant 0 : i32
    return %c0_i32, %c0_i32_0 : i32, i32
  }
  func.func @transform_2(%arg0: i32, %arg1: i32) -> (i32, i32) {
    %c0_i32 = arith.constant 0 : i32
    %c0_i32_0 = arith.constant 0 : i32
    %c0_i32_1 = arith.constant 0 : i32
    return %c0_i32, %c0_i32_0 : i32, i32
  }
  func.func @transform_3(%arg0: i32, %arg1: i32) -> (i32, i32) {
    %c0_i32 = arith.constant 0 : i32
    %c0_i32_0 = arith.constant 0 : i32
    %c0_i32_1 = arith.constant 0 : i32
    return %c0_i32, %c0_i32_0 : i32, i32
  }
  func.func @transform_4(%arg0: i32, %arg1: i32) -> (i32, i32) {
    %c0_i32 = arith.constant 0 : i32
    %c0_i32_0 = arith.constant 0 : i32
    %c0_i32_1 = arith.constant 0 : i32
    return %c0_i32, %c0_i32_0 : i32, i32
  }
  func.func @transform_5(%arg0: i32, %arg1: i32) -> (i32, i32) {
    %c0_i32 = arith.constant 0 : i32
    %c0_i32_0 = arith.constant 0 : i32
    %c0_i32_1 = arith.constant 0 : i32
    return %c0_i32, %c0_i32_0 : i32, i32
  }
}

</mosaic_0001>

<llo_original>
// kernel: tpu_custom_call.1
$region0: #{tpu_custom_call.1}
  #allocation0 [shape = 'u32[]', space=smem, size = 0x4, offset = 0x4, fixed_abs, tag = 'smem constant byte address 0x4 - core index']
  #allocation1 [shape = 'u32[144,128]{1,0:T(1,128)}', space=vmem, size = 0x12000, scoped, tag = 'internal scratch']
  %s0 = inlined_call_operand.vmem [shape: f32[2,4,256], index: 0, kind: input, shape index: {}]
  %s1 = inlined_call_operand.vmem [shape: bf16[64,4], index: 1, kind: input, shape index: {}]
  %s2 = inlined_call_operand.vmem [shape: f32[64,1], index: 2, kind: input, shape index: {}]
  %s3 = inlined_call_operand.vmem [shape: bf16[128,64], index: 3, kind: input, shape index: {}]
  %s4 = inlined_call_operand.vmem [shape: f32[128,1], index: 4, kind: output, shape index: {0}]
  %s5 = inlined_call_operand.vmem [shape: f32[128,1], index: 5, kind: output, shape index: {1}]
  %6 = xla_tuple %s4, %s5
  %s7 = sld [smem:[#allocation0]]
  $region61: #{tpu_custom_call.1} parent=0
    _
  %s9 = ssub.s32 1, %s7
  %s10 = scalar_select 0, %s9, %s7
  loop: start=0, step=1, limit=4
  $region2: #{tpu_custom_call.1} parent=0 // loop_pre_header
    _
  $region3: #{tpu_custom_call.1} parent=0 // loop_header
    %s12 = sphi 0, %s16
    %p13 = scmp.ge.s32.totalorder %s12, 4
    %s19 = sphi 0, %s31
    %s20 = sphi 0, %s27
    %s21 = sphi 0, %s19
    %s22 = sphi 0, %s20
    %s23 = sphi 0, %s21
    %s24 = sphi 0, %s22
    %s36 = sphi 0, %s38
    %s39 = sphi 0, %s36
    %s40 = sphi 0, %s39
    %s56 = sphi 0, %s40
    %s60 = sphi 0, %s60
    %s62 = sphi 0, %s60
    %s63 = sphi 0, %s62
    %s77 = sphi 0, %s63
    %s81 = sphi 0, %s81
    %s83 = sphi 0, %s81
    %s84 = sphi 0, %s83
    %s98 = sphi 0, %s84
    %s102 = sphi 0, %s102
    %s104 = sphi 0, %s102
    %s105 = sphi 0, %s104
    %s119 = sphi 0, %s105
    %s123 = sphi 0, %s123
    %s125 = sphi 0, %s123
    %s126 = sphi 0, %s125
    %s140 = sphi 0, %s126
    %s144 = sphi 0, %s144
    %s146 = sphi 0, %s144
    %s147 = sphi 0, %s146
    %s161 = sphi 0, %s147
  $region4: #{tpu_custom_call.1} parent=0 // loop_header_branch
    %15 = sbr.rel (%p13) target = $region8
  $region5: #{tpu_custom_call.1} parent=0 // loop_body
    %s17 = ssub.s32 %s12, 1
    %s18 = ssub.s32 %s12, 2
    %s25 = sadd.s32 1, %s20
    %p26 = scmp.ge.s32.totalorder %s25, 1
    %s27 = scalar_select %p26, 0, %s25
    %s28 = sadd.s32 1, %s19
    %s29 = scalar_select %p26, %s28, %s19
    %p30 = scmp.ge.s32.totalorder %s29, 2
    %s31 = scalar_select %p30, 0, %s29
    %s32 = ssub.s32 %s19, %s31
    %s33 = ssub.s32 %s20, %s27
    %s34 = sor.u32 %s32, %s33
    %p35 = scmp.eq.s32.totalorder %s34, 0
    %s37 = sadd.s32 %s36, 1
    %s38 = scalar_select %p35, %s36, %s37
    %p41 = pneg %p35
    %p42 = scmp.eq.s32.totalorder %s12, 1
    %p43 = por %p41, %p42
    %p44 = scmp.ne.s32.totalorder %s36, %s39
    %p45 = scmp.eq.s32.totalorder %s12, 0
    %p46 = por %p44, %p45
    %p47 = scmp.ne.s32.totalorder %s36, %s39
    %p48 = scmp.eq.s32.totalorder %s17, 1
    %p49 = por %p47, %p48
    %p50 = scmp.ne.s32.totalorder %s39, %s40
    %p51 = scmp.eq.s32.totalorder %s17, 0
    %p52 = por %p50, %p51
    %p53 = scmp.ne.s32.totalorder %s39, %s40
    %p54 = scmp.eq.s32.totalorder %s18, 1
    %p55 = por %p53, %p54
    %p57 = scmp.ne.s32.totalorder %s40, %s56
    %p58 = scmp.eq.s32.totalorder %s18, 0
    %p59 = por %p57, %p58
    %s61 = sadd.s32 %s60, 1
    %p64 = scmp.eq.s32.totalorder %s12, 1
    %p65 = scmp.ne.s32.totalorder %s60, %s62
    %p66 = scmp.eq.s32.totalorder %s12, 0
    %p67 = por %p65, %p66
    %p68 = scmp.ne.s32.totalorder %s60, %s62
    %p69 = scmp.eq.s32.totalorder %s17, 1
    %p70 = por %p68, %p69
    %p71 = scmp.ne.s32.totalorder %s62, %s63
    %p72 = scmp.eq.s32.totalorder %s17, 0
    %p73 = por %p71, %p72
    %p74 = scmp.ne.s32.totalorder %s62, %s63
    %p75 = scmp.eq.s32.totalorder %s18, 1
    %p76 = por %p74, %p75
    %p78 = scmp.ne.s32.totalorder %s63, %s77
    %p79 = scmp.eq.s32.totalorder %s18, 0
    %p80 = por %p78, %p79
    %s82 = sadd.s32 %s81, 1
    %p85 = scmp.eq.s32.totalorder %s12, 1
    %p86 = scmp.ne.s32.totalorder %s81, %s83
    %p87 = scmp.eq.s32.totalorder %s12, 0
    %p88 = por %p86, %p87
    %p89 = scmp.ne.s32.totalorder %s81, %s83
    %p90 = scmp.eq.s32.totalorder %s17, 1
    %p91 = por %p89, %p90
    %p92 = scmp.ne.s32.totalorder %s83, %s84
    %p93 = scmp.eq.s32.totalorder %s17, 0
    %p94 = por %p92, %p93
    %p95 = scmp.ne.s32.totalorder %s83, %s84
    %p96 = scmp.eq.s32.totalorder %s18, 1
    %p97 = por %p95, %p96
    %p99 = scmp.ne.s32.totalorder %s84, %s98
    %p100 = scmp.eq.s32.totalorder %s18, 0
    %p101 = por %p99, %p100
    %s103 = sadd.s32 %s102, 1
    %p106 = scmp.eq.s32.totalorder %s12, 1
    %p107 = scmp.ne.s32.totalorder %s102, %s104
    %p108 = scmp.eq.s32.totalorder %s12, 0
    %p109 = por %p107, %p108
    %p110 = scmp.ne.s32.totalorder %s102, %s104
    %p111 = scmp.eq.s32.totalorder %s17, 1
    %p112 = por %p110, %p111
    %p113 = scmp.ne.s32.totalorder %s104, %s105
    %p114 = scmp.eq.s32.totalorder %s17, 0
    %p115 = por %p113, %p114
    %p116 = scmp.ne.s32.totalorder %s104, %s105
    %p117 = scmp.eq.s32.totalorder %s18, 1
    %p118 = por %p116, %p117
    %p120 = scmp.ne.s32.totalorder %s105, %s119
    %p121 = scmp.eq.s32.totalorder %s18, 0
    %p122 = por %p120, %p121
    %s124 = sadd.s32 %s123, 1
    %p127 = scmp.eq.s32.totalorder %s12, 1
    %p128 = scmp.ne.s32.totalorder %s123, %s125
    %p129 = scmp.eq.s32.totalorder %s12, 0
    %p130 = por %p128, %p129
    %p131 = scmp.ne.s32.totalorder %s123, %s125
    %p132 = scmp.eq.s32.totalorder %s17, 1
    %p133 = por %p131, %p132
    %p134 = scmp.ne.s32.totalorder %s125, %s126
    %p135 = scmp.eq.s32.totalorder %s17, 0
    %p136 = por %p134, %p135
    %p137 = scmp.ne.s32.totalorder %s125, %s126
    %p138 = scmp.eq.s32.totalorder %s18, 1
    %p139 = por %p137, %p138
    %p141 = scmp.ne.s32.totalorder %s126, %s140
    %p142 = scmp.eq.s32.totalorder %s18, 0
    %p143 = por %p141, %p142
    %s145 = sadd.s32 %s144, 1
    %p148 = scmp.eq.s32.totalorder %s12, 1
    %p149 = scmp.ne.s32.totalorder %s144, %s146
    %p150 = scmp.eq.s32.totalorder %s12, 0
    %p151 = por %p149, %p150
    %p152 = scmp.ne.s32.totalorder %s144, %s146
    %p153 = scmp.eq.s32.totalorder %s17, 1
    %p154 = por %p152, %p153
    %p155 = scmp.ne.s32.totalorder %s146, %s147
    %p156 = scmp.eq.s32.totalorder %s17, 0
    %p157 = por %p155, %p156
    %p158 = scmp.ne.s32.totalorder %s146, %s147
    %p159 = scmp.eq.s32.totalorder %s18, 1
    %p160 = por %p158, %p159
    %p162 = scmp.ne.s32.totalorder %s147, %s161
    %p163 = scmp.eq.s32.totalorder %s18, 0
    %p164 = por %p162, %p163
    %p165 = scmp.le.s32.totalorder 1, %s12
    %p166 = scmp.lt.s32.totalorder %s12, 3
    %p167 = pnand %p165, %p166
    %p168 = pneg %p167
    // Predicated region
    $region9: #{tpu_custom_call.1} parent=5 // pred_check
      _
    $region10: #{tpu_custom_call.1} parent=5 // pred_check_branch
      %170 = sbr.rel (%p167) target = $region12
    $region11: #{tpu_custom_call.1} parent=5 // pred_region
      %s171 = ssub.s32 %s12, 1
      // Predicated region
      $region13: #{tpu_custom_call.1} parent=11 // pred_check
        %p172 = pneg %p73
      $region14: #{tpu_custom_call.1} parent=11 // pred_check_branch
        %174 = sbr.rel (%p172) target = $region16
      $region15: #{tpu_custom_call.1} parent=11 // pred_region
        _
      $region16: #{tpu_custom_call.1} parent=11 // pred_fallthru
        _
      // Predicated region
      $region17: #{tpu_custom_call.1} parent=11 // pred_check
        %p175 = pneg %p94
      $region18: #{tpu_custom_call.1} parent=11 // pred_check_branch
        %177 = sbr.rel (%p175) target = $region20
      $region19: #{tpu_custom_call.1} parent=11 // pred_region
        _
      $region20: #{tpu_custom_call.1} parent=11 // pred_fallthru
        _
      // Predicated region
      $region21: #{tpu_custom_call.1} parent=11 // pred_check
        %p178 = pneg %p115
      $region22: #{tpu_custom_call.1} parent=11 // pred_check_branch
        %180 = sbr.rel (%p178) target = $region24
      $region23: #{tpu_custom_call.1} parent=11 // pred_region
        _
      $region24: #{tpu_custom_call.1} parent=11 // pred_fallthru
        _
    $region12: #{tpu_custom_call.1} parent=5 // pred_fallthru
      _
    %p181 = scmp.lt.s32.totalorder %s12, 2
    // Predicated region
    $region25: #{tpu_custom_call.1} parent=5 // pred_check
      %p182 = pneg %p181
    $region26: #{tpu_custom_call.1} parent=5 // pred_check_branch
      %184 = sbr.rel (%p182) target = $region28
    $region27: #{tpu_custom_call.1} parent=5 // pred_region
      // Predicated region
      $region29: #{tpu_custom_call.1} parent=27 // pred_check
        %p185 = pneg %p46
      $region30: #{tpu_custom_call.1} parent=27 // pred_check_branch
        %187 = sbr.rel (%p185) target = $region32
      $region31: #{tpu_custom_call.1} parent=27 // pred_region
        %s188 = smul.u32 2, %s20
        %p189 = scmp.lt.s32.totalorder %s19, 1
        %s190 = scalar_select %p189, %s19, 1
        %p191 = scmp.lt.s32.totalorder %s188, 1
        %s192 = scalar_select %p191, %s188, 1
        %s193 = smul.addr %s190, 2
        %s194 = sadd.s32 %s192, %s193
        %s195 = smul.addr %s194, 4
        %s196 = scalar_lea.vmem %s0, %s195
        %s197 = smul.u32 2, %s20
      $region32: #{tpu_custom_call.1} parent=27 // pred_fallthru
        _
    $region28: #{tpu_custom_call.1} parent=5 // pred_fallthru
      _
    %p198 = scmp.le.s32.totalorder 1, %s12
    %p199 = scmp.lt.s32.totalorder %s12, 3
    %p200 = pnand %p198, %p199
    %p201 = pneg %p200
    // Predicated region
    $region33: #{tpu_custom_call.1} parent=5 // pred_check
      _
    $region34: #{tpu_custom_call.1} parent=5 // pred_check_branch
      %203 = sbr.rel (%p200) target = $region36
    $region35: #{tpu_custom_call.1} parent=5 // pred_region
      %s204 = ssub.s32 %s12, 1
      %s205 = smul.u32 2, %s22
      %p206 = scmp.lt.s32.totalorder %s21, 1
      %s207 = scalar_select %p206, %s21, 1
      %p208 = scmp.lt.s32.totalorder %s205, 1
      %s209 = scalar_select %p208, %s205, 1
      %s210 = smul.addr %s207, 2
      %s211 = sadd.s32 %s209, %s210
      %s212 = smul.addr %s211, 4
      %s213 = scalar_lea.vmem %s0, %s212
      %p214 = pneg %p52
      %p215 = pneg %p49
      %p216 = pneg %p73
      %p217 = pneg %p70
      %p218 = pneg %p94
      %p219 = pneg %p91
      %p220 = pneg %p115
      %p221 = pneg %p112
      %p222 = pneg %p136
      %p223 = pneg %p133
      %p224 = pneg %p157
      %p225 = pneg %p154
      %s226 = smul.u32 2, %s22
      %p227 = scmp.lt.s32.totalorder %s21, 1
      %s228 = scalar_select %p227, %s21, 1
      %p229 = scmp.lt.s32.totalorder %s226, 1
      %s230 = scalar_select %p229, %s226, 1
      %s231 = smul.addr %s228, 2
      %s232 = sadd.s32 %s230, %s231
      %s233 = smul.addr %s232, 4
      %s234 = scalar_lea.vmem %s0, %s233
      %s235 = smul.u32 2, %s22
      %v237 = vld [vmem:[%s234] sm:$0xff]
      %v239 = vcombine.high %v237, %v237
      %v241 = vpack.c.bf16 %v237, %v237
      %v242 = vpack.c.bf16 %v239, %v239
      %v243 = vld [vmem:[%s1] sm:$0xf]
      %v244 = vld [vmem:[%s1 + $0x4] sm:$0xf]
      %v245 = vld [vmem:[%s1 + $0x8] sm:$0xf]
      %v246 = vld [vmem:[%s1 + $0xc] sm:$0xf]
      %v247 = vld [vmem:[%s1 + $0x10] sm:$0xf]
      %v248 = vld [vmem:[%s1 + $0x14] sm:$0xf]
      %v249 = vld [vmem:[%s1 + $0x18] sm:$0xf]
      %v250 = vld [vmem:[%s1 + $0x1c] sm:$0xf]
      %v251 = vld [vmem:[%s2] sm:$0xff]
      %v252 = vld [vmem:[%s2 + $0x8] sm:$0xff]
      %v253 = vld [vmem:[%s2 + $0x10] sm:$0xff]
      %v254 = vld [vmem:[%s2 + $0x18] sm:$0xff]
      %v255 = vld [vmem:[%s2 + $0x20] sm:$0xff]
      %v256 = vld [vmem:[%s2 + $0x28] sm:$0xff]
      %v257 = vld [vmem:[%s2 + $0x30] sm:$0xff]
      %v258 = vld [vmem:[%s2 + $0x38] sm:$0xff]
      %260 = vset.pattern.permute.xlu0 0
      %261 = vperm.xlu0 %260, %v251
      %v262 = vpop.permute.xlu0 %261
      %265 = vset.pattern.permute.xlu0 0
      %266 = vperm.xlu0 %265, %v252
      %v267 = vpop.permute.xlu0 %266
      %270 = vset.pattern.permute.xlu0 0
      %271 = vperm.xlu0 %270, %v253
      %v272 = vpop.permute.xlu0 %271
      %275 = vset.pattern.permute.xlu0 0
      %276 = vperm.xlu0 %275, %v254
      %v277 = vpop.permute.xlu0 %276
      %280 = vset.pattern.permute.xlu0 0
      %281 = vperm.xlu0 %280, %v255
      %v282 = vpop.permute.xlu0 %281
      %285 = vset.pattern.permute.xlu0 0
      %286 = vperm.xlu0 %285, %v256
      %v287 = vpop.permute.xlu0 %286
      %290 = vset.pattern.permute.xlu0 0
      %291 = vperm.xlu0 %290, %v257
      %v292 = vpop.permute.xlu0 %291
      %295 = vset.pattern.permute.xlu0 0
      %296 = vperm.xlu0 %295, %v258
      %v297 = vpop.permute.xlu0 %296
      %v307 = vunpack.c.l.b16 %v243
      %v308 = vunpack.c.l.b16 %v244
      %v309 = vunpack.c.l.b16 %v245
      %v310 = vunpack.c.l.b16 %v246
      %v311 = vunpack.c.l.b16 %v247
      %v312 = vunpack.c.l.b16 %v248
      %v313 = vunpack.c.l.b16 %v249
      %v314 = vunpack.c.l.b16 %v250
      %v315 = vpack.c.b16 %v308, %v307
      %v316 = vpack.c.b16 %v310, %v309
      %v317 = vpack.c.b16 %v312, %v311
      %v318 = vpack.c.b16 %v314, %v313
      %vm319 = vcmask 31744
      %v321 = vsel %vm319, %v315, 0
      %v324 = vsel %vm319, %v316, 0
      %v327 = vsel %vm319, %v317, 0
      %v330 = vsel %vm319, %v318, 0
      %vm332 = vcmask 1041408
      %v334 = vsel %vm332, %v241, 0
      %v337 = vsel %vm332, %v242, 0
      %339 = vmatprep.subr.bf16.mxu0 0
      %340 = vmatpush1.bf16.msra.mxu0 0
      %341 = vmatprep.subr.bf16.mxu0 0
      %342 = vmatpush1.bf16.msra.mxu0 0
      %343 = vmatprep.subr.bf16.mxu0 0
      %344 = vmatpush1.bf16.msra.mxu0 0
      %345 = vmatprep.subr.bf16.mxu0 0
      %346 = vmatpush1.bf16.msra.mxu0 0
      %347 = vmatprep.subr.bf16.mxu0 0
      %348 = vmatpush1.bf16.msra.mxu0 0
      %349 = vmatprep.subr.bf16.mxu0 0
      %350 = vmatpush1.bf16.msra.mxu0 0
      %351 = vmatprep.subr.bf16.mxu0 0
      %352 = vmatpush1.bf16.msra.mxu0 0
      %353 = vmatprep.subr.bf16.mxu0 %v337
      %354 = vmatpush1.bf16.msra.mxu0 %v334
      %355 = vmatprep.subr.bf16.mxu0 0
      %356 = vmatpush2.bf16.msra.mxu0 0
      %357 = vmatprep.subr.bf16.mxu0 0
      %358 = vmatpush2.bf16.msra.mxu0 0
      %359 = vmatprep.subr.bf16.mxu0 0
      %360 = vmatpush2.bf16.msra.mxu0 0
      %361 = vmatprep.subr.bf16.mxu0 0
      %362 = vmatpush2.bf16.msra.mxu0 0
      %363 = vmatprep.subr.bf16.mxu0 0
      %364 = vmatpush2.bf16.msra.mxu0 0
      %365 = vmatprep.subr.bf16.mxu0 0
      %366 = vmatpush2.bf16.msra.mxu0 0
      %367 = vmatprep.subr.bf16.mxu0 0
      %368 = vmatpush2.bf16.msra.mxu0 0
      %369 = vmatprep.subr.bf16.mxu0 0
      %370 = vmatpush2.bf16.msra.mxu0 0
      %371 = vmatprep.mubr.bf16.mxu0 0
      %372 = vmatmul.mubr.bf16.gmra.mxu0 %v321
      %v373 = vpop.f32.mrf.mxu0
      %v374 = vadd.f32 %v262, %v373
      %v375 = vpop.f32.mrf.mxu0
      %v376 = vadd.f32 %v262, %v375
      %v377 = vpop.f32.mrf.mxu0
      %v378 = vadd.f32 %v267, %v377
      %v379 = vpop.f32.mrf.mxu0
      %v380 = vadd.f32 %v267, %v379
      %381 = vmatprep.mubr.bf16.mxu0 0
      %382 = vmatmul.mubr.bf16.gmra.mxu0 %v324
      %v383 = vpop.f32.mrf.mxu0
      %v384 = vadd.f32 %v272, %v383
      %v385 = vpop.f32.mrf.mxu0
      %v386 = vadd.f32 %v272, %v385
      %v387 = vpop.f32.mrf.mxu0
      %v388 = vadd.f32 %v277, %v387
      %v389 = vpop.f32.mrf.mxu0
      %v390 = vadd.f32 %v277, %v389
      %391 = vmatprep.mubr.bf16.mxu0 0
      %392 = vmatmul.mubr.bf16.gmra.mxu0 %v327
      %v393 = vpop.f32.mrf.mxu0
      %v394 = vadd.f32 %v282, %v393
      %v395 = vpop.f32.mrf.mxu0
      %v396 = vadd.f32 %v282, %v395
      %v397 = vpop.f32.mrf.mxu0
      %v398 = vadd.f32 %v287, %v397
      %v399 = vpop.f32.mrf.mxu0
      %v400 = vadd.f32 %v287, %v399
      %401 = vmatprep.mubr.bf16.mxu0 0
      %402 = vmatmul.mubr.bf16.gmra.mxu0 %v330
      %v403 = vpop.f32.mrf.mxu0
      %v404 = vadd.f32 %v292, %v403
      %v405 = vpop.f32.mrf.mxu0
      %v406 = vadd.f32 %v292, %v405
      %v407 = vpop.f32.mrf.mxu0
      %v408 = vadd.f32 %v297, %v407
      %v409 = vpop.f32.mrf.mxu0
      %v410 = vadd.f32 %v297, %v409
      %411 = vdwg.mxu0
      %vm412 = vcmp.gt.f32.partialorder %v374, 0.0
      %vm413 = vcmp.gt.f32.partialorder %v376, 0.0
      %vm414 = vcmp.gt.f32.partialorder %v378, 0.0
      %vm415 = vcmp.gt.f32.partialorder %v380, 0.0
      %vm416 = vcmp.gt.f32.partialorder %v384, 0.0
      %vm417 = vcmp.gt.f32.partialorder %v386, 0.0
      %vm418 = vcmp.gt.f32.partialorder %v388, 0.0
      %vm419 = vcmp.gt.f32.partialorder %v390, 0.0
      %vm420 = vcmp.gt.f32.partialorder %v394, 0.0
      %vm421 = vcmp.gt.f32.partialorder %v396, 0.0
      %vm422 = vcmp.gt.f32.partialorder %v398, 0.0
      %vm423 = vcmp.gt.f32.partialorder %v400, 0.0
      %vm424 = vcmp.gt.f32.partialorder %v404, 0.0
      %vm425 = vcmp.gt.f32.partialorder %v406, 0.0
      %vm426 = vcmp.gt.f32.partialorder %v408, 0.0
      %vm427 = vcmp.gt.f32.partialorder %v410, 0.0
      %v428 = vmul.f32 %v374, 0.2
      %v429 = vmul.f32 %v376, 0.2
      %v430 = vmul.f32 %v378, 0.2
      %v431 = vmul.f32 %v380, 0.2
      %v432 = vmul.f32 %v384, 0.2
      %v433 = vmul.f32 %v386, 0.2
      %v434 = vmul.f32 %v388, 0.2
      %v435 = vmul.f32 %v390, 0.2
      %v436 = vmul.f32 %v394, 0.2
      %v437 = vmul.f32 %v396, 0.2
      %v438 = vmul.f32 %v398, 0.2
      %v439 = vmul.f32 %v400, 0.2
      %v440 = vmul.f32 %v404, 0.2
      %v441 = vmul.f32 %v406, 0.2
      %v442 = vmul.f32 %v408, 0.2
      %v443 = vmul.f32 %v410, 0.2
      %v444 = vsel %vm412, %v374, %v428
      %v445 = vsel %vm413, %v376, %v429
      %v446 = vsel %vm414, %v378, %v430
      %v447 = vsel %vm415, %v380, %v431
      %v448 = vsel %vm416, %v384, %v432
      %v449 = vsel %vm417, %v386, %v433
      %v450 = vsel %vm418, %v388, %v434
      %v451 = vsel %vm419, %v390, %v435
      %v452 = vsel %vm420, %v394, %v436
      %v453 = vsel %vm421, %v396, %v437
      %v454 = vsel %vm422, %v398, %v438
      %v455 = vsel %vm423, %v400, %v439
      %v456 = vsel %vm424, %v404, %v440
      %v457 = vsel %vm425, %v406, %v441
      %v458 = vsel %vm426, %v408, %v442
      %v459 = vsel %vm427, %v410, %v443
      %v460 = vld [vmem:[%s3] sm:$0xf]
      %v461 = vld [vmem:[%s3 + $0x4] sm:$0xf]
      %v462 = vld [vmem:[%s3 + $0x8] sm:$0xf]
      %v463 = vld [vmem:[%s3 + $0xc] sm:$0xf]
      %v464 = vld [vmem:[%s3 + $0x10] sm:$0xf]
      %v465 = vld [vmem:[%s3 + $0x14] sm:$0xf]
      %v466 = vld [vmem:[%s3 + $0x18] sm:$0xf]
      %v467 = vld [vmem:[%s3 + $0x1c] sm:$0xf]
      %v468 = vld [vmem:[%s3 + $0x20] sm:$0xf]
      %v469 = vld [vmem:[%s3 + $0x24] sm:$0xf]
      %v470 = vld [vmem:[%s3 + $0x28] sm:$0xf]
      %v471 = vld [vmem:[%s3 + $0x2c] sm:$0xf]
      %v472 = vld [vmem:[%s3 + $0x30] sm:$0xf]
      %v473 = vld [vmem:[%s3 + $0x34] sm:$0xf]
      %v474 = vld [vmem:[%s3 + $0x38] sm:$0xf]
      %v475 = vld [vmem:[%s3 + $0x3c] sm:$0xf]
      %v476 = vpack.c.bf16 %v446, %v444
      %v477 = vpack.c.bf16 %v447, %v445
      %v478 = vpack.c.bf16 %v450, %v448
      %v479 = vpack.c.bf16 %v451, %v449
      %v480 = vpack.c.bf16 %v454, %v452
      %v481 = vpack.c.bf16 %v455, %v453
      %v482 = vpack.c.bf16 %v458, %v456
      %v483 = vpack.c.bf16 %v459, %v457
      %v500 = vunpack.c.l.b16 %v460
      %v501 = vunpack.c.l.b16 %v461
      %v502 = vunpack.c.l.b16 %v462
      %v503 = vunpack.c.l.b16 %v463
      %v504 = vunpack.c.l.b16 %v464
      %v505 = vunpack.c.l.b16 %v465
      %v506 = vunpack.c.l.b16 %v466
      %v507 = vunpack.c.l.b16 %v467
      %v508 = vunpack.c.l.b16 %v468
      %v509 = vunpack.c.l.b16 %v469
      %v510 = vunpack.c.l.b16 %v470
      %v511 = vunpack.c.l.b16 %v471
      %v512 = vunpack.c.l.b16 %v472
      %v513 = vunpack.c.l.b16 %v473
      %v514 = vunpack.c.l.b16 %v474
      %v515 = vunpack.c.l.b16 %v475
      %v516 = vpack.c.b16 %v501, %v500
      %v517 = vpack.c.b16 %v503, %v502
      %v518 = vpack.c.b16 %v505, %v504
      %v519 = vpack.c.b16 %v507, %v506
      %v520 = vpack.c.b16 %v509, %v508
      %v521 = vpack.c.b16 %v511, %v510
      %v522 = vpack.c.b16 %v513, %v512
      %v523 = vpack.c.b16 %v515, %v514
      %vm524 = vcmask 523264
      %v526 = vsel %vm524, %v516, 0
      %v529 = vsel %vm524, %v517, 0
      %v532 = vsel %vm524, %v518, 0
      %v535 = vsel %vm524, %v519, 0
      %v538 = vsel %vm524, %v520, 0
      %v541 = vsel %vm524, %v521, 0
      %v544 = vsel %vm524, %v522, 0
      %v547 = vsel %vm524, %v523, 0
      %549 = vmatprep.subr.bf16.mxu0 0
      %550 = vmatpush1.bf16.msra.mxu0 0
      %551 = vmatprep.subr.bf16.mxu0 0
      %552 = vmatpush1.bf16.msra.mxu0 0
      %553 = vmatprep.subr.bf16.mxu0 0
      %554 = vmatpush1.bf16.msra.mxu0 0
      %555 = vmatprep.subr.bf16.mxu0 0
      %556 = vmatpush1.bf16.msra.mxu0 0
      %557 = vmatprep.subr.bf16.mxu0 %v483
      %558 = vmatpush1.bf16.msra.mxu0 %v482
      %559 = vmatprep.subr.bf16.mxu0 %v481
      %560 = vmatpush1.bf16.msra.mxu0 %v480
      %561 = vmatprep.subr.bf16.mxu0 %v479
      %562 = vmatpush1.bf16.msra.mxu0 %v478
      %563 = vmatprep.subr.bf16.mxu0 %v477
      %564 = vmatpush1.bf16.msra.mxu0 %v476
      %565 = vmatprep.subr.bf16.mxu0 0
      %566 = vmatpush2.bf16.msra.mxu0 0
      %567 = vmatprep.subr.bf16.mxu0 0
      %568 = vmatpush2.bf16.msra.mxu0 0
      %569 = vmatprep.subr.bf16.mxu0 0
      %570 = vmatpush2.bf16.msra.mxu0 0
      %571 = vmatprep.subr.bf16.mxu0 0
      %572 = vmatpush2.bf16.msra.mxu0 0
      %573 = vmatprep.subr.bf16.mxu0 0
      %574 = vmatpush2.bf16.msra.mxu0 0
      %575 = vmatprep.subr.bf16.mxu0 0
      %576 = vmatpush2.bf16.msra.mxu0 0
      %577 = vmatprep.subr.bf16.mxu0 0
      %578 = vmatpush2.bf16.msra.mxu0 0
      %579 = vmatprep.subr.bf16.mxu0 0
      %580 = vmatpush2.bf16.msra.mxu0 0
      %581 = vmatprep.mubr.bf16.mxu0 0
      %582 = vmatmul.mubr.bf16.gmra.mxu0 %v526
      %v583 = vpop.f32.mrf.mxu0
      %v584 = vadd.f32 0.0, %v583
      %v585 = vpop.f32.mrf.mxu0
      %v586 = vadd.f32 0.0, %v585
      %v587 = vpop.f32.mrf.mxu0
      %v588 = vadd.f32 0.0, %v587
      %v589 = vpop.f32.mrf.mxu0
      %v590 = vadd.f32 0.0, %v589
      %591 = vmatprep.mubr.bf16.mxu0 0
      %592 = vmatmul.mubr.bf16.gmra.mxu0 %v529
      %v593 = vpop.f32.mrf.mxu0
      %v594 = vadd.f32 0.0, %v593
      %v595 = vpop.f32.mrf.mxu0
      %v596 = vadd.f32 0.0, %v595
      %v597 = vpop.f32.mrf.mxu0
      %v598 = vadd.f32 0.0, %v597
      %v599 = vpop.f32.mrf.mxu0
      %v600 = vadd.f32 0.0, %v599
      %601 = vmatprep.mubr.bf16.mxu0 0
      %602 = vmatmul.mubr.bf16.gmra.mxu0 %v532
      %v603 = vpop.f32.mrf.mxu0
      %v604 = vadd.f32 0.0, %v603
      %v605 = vpop.f32.mrf.mxu0
      %v606 = vadd.f32 0.0, %v605
      %v607 = vpop.f32.mrf.mxu0
      %v608 = vadd.f32 0.0, %v607
      %v609 = vpop.f32.mrf.mxu0
      %v610 = vadd.f32 0.0, %v609
      %611 = vmatprep.mubr.bf16.mxu0 0
      %612 = vmatmul.mubr.bf16.gmra.mxu0 %v535
      %v613 = vpop.f32.mrf.mxu0
      %v614 = vadd.f32 0.0, %v613
      %v615 = vpop.f32.mrf.mxu0
      %v616 = vadd.f32 0.0, %v615
      %v617 = vpop.f32.mrf.mxu0
      %v618 = vadd.f32 0.0, %v617
      %v619 = vpop.f32.mrf.mxu0
      %v620 = vadd.f32 0.0, %v619
      %621 = vmatprep.mubr.bf16.mxu0 0
      %622 = vmatmul.mubr.bf16.gmra.mxu0 %v538
      %v623 = vpop.f32.mrf.mxu0
      %v624 = vadd.f32 0.0, %v623
      %v625 = vpop.f32.mrf.mxu0
      %v626 = vadd.f32 0.0, %v625
      %v627 = vpop.f32.mrf.mxu0
      %v628 = vadd.f32 0.0, %v627
      %v629 = vpop.f32.mrf.mxu0
      %v630 = vadd.f32 0.0, %v629
      %631 = vmatprep.mubr.bf16.mxu0 0
      %632 = vmatmul.mubr.bf16.gmra.mxu0 %v541
      %v633 = vpop.f32.mrf.mxu0
      %v634 = vadd.f32 0.0, %v633
      %v635 = vpop.f32.mrf.mxu0
      %v636 = vadd.f32 0.0, %v635
      %v637 = vpop.f32.mrf.mxu0
      %v638 = vadd.f32 0.0, %v637
      %v639 = vpop.f32.mrf.mxu0
      %v640 = vadd.f32 0.0, %v639
      %641 = vmatprep.mubr.bf16.mxu0 0
      %642 = vmatmul.mubr.bf16.gmra.mxu0 %v544
      %v643 = vpop.f32.mrf.mxu0
      %v644 = vadd.f32 0.0, %v643
      %v645 = vpop.f32.mrf.mxu0
      %v646 = vadd.f32 0.0, %v645
      %v647 = vpop.f32.mrf.mxu0
      %v648 = vadd.f32 0.0, %v647
      %v649 = vpop.f32.mrf.mxu0
      %v650 = vadd.f32 0.0, %v649
      %651 = vmatprep.mubr.bf16.mxu0 0
      %652 = vmatmul.mubr.bf16.gmra.mxu0 %v547
      %v653 = vpop.f32.mrf.mxu0
      %v654 = vadd.f32 0.0, %v653
      %v655 = vpop.f32.mrf.mxu0
      %v656 = vadd.f32 0.0, %v655
      %v657 = vpop.f32.mrf.mxu0
      %v658 = vadd.f32 0.0, %v657
      %v659 = vpop.f32.mrf.mxu0
      %v660 = vadd.f32 0.0, %v659
      %661 = vdwg.mxu0
      %p662 = scmp.eq.s32.totalorder %s21, 0
      %p663 = scmp.eq.s32.totalorder %s22, 0
      %p664 = pnand %p662, %p663
      %p665 = pneg %p664
      // Predicated region
      $region37: #{tpu_custom_call.1} parent=35 // pred_check
        _
      $region38: #{tpu_custom_call.1} parent=35 // pred_check_branch
        %667 = sbr.rel (%p664) target = $region40
      $region39: #{tpu_custom_call.1} parent=35 // pred_region
        %vm668 = vcmask 7168
        %669 = vst.msk [vmem:[%s4] sm:$0xff] %vm668, 0.0
        %670 = vst.msk [vmem:[%s4 + $0x8] sm:$0xff] %vm668, 0.0
        %671 = vst.msk [vmem:[%s4 + $0x10] sm:$0xff] %vm668, 0.0
        %672 = vst.msk [vmem:[%s4 + $0x18] sm:$0xff] %vm668, 0.0
        %673 = vst.msk [vmem:[%s4 + $0x20] sm:$0xff] %vm668, 0.0
        %674 = vst.msk [vmem:[%s4 + $0x28] sm:$0xff] %vm668, 0.0
        %675 = vst.msk [vmem:[%s4 + $0x30] sm:$0xff] %vm668, 0.0
        %676 = vst.msk [vmem:[%s4 + $0x38] sm:$0xff] %vm668, 0.0
        %677 = vst.msk [vmem:[%s4 + $0x40] sm:$0xff] %vm668, 0.0
        %678 = vst.msk [vmem:[%s4 + $0x48] sm:$0xff] %vm668, 0.0
        %679 = vst.msk [vmem:[%s4 + $0x50] sm:$0xff] %vm668, 0.0
        %680 = vst.msk [vmem:[%s4 + $0x58] sm:$0xff] %vm668, 0.0
        %681 = vst.msk [vmem:[%s4 + $0x60] sm:$0xff] %vm668, 0.0
        %682 = vst.msk [vmem:[%s4 + $0x68] sm:$0xff] %vm668, 0.0
        %683 = vst.msk [vmem:[%s4 + $0x70] sm:$0xff] %vm668, 0.0
        %684 = vst.msk [vmem:[%s4 + $0x78] sm:$0xff] %vm668, 0.0
        %685 = vst.msk [vmem:[%s5] sm:$0xff] %vm668, 0.0
        %686 = vst.msk [vmem:[%s5 + $0x8] sm:$0xff] %vm668, 0.0
        %687 = vst.msk [vmem:[%s5 + $0x10] sm:$0xff] %vm668, 0.0
        %688 = vst.msk [vmem:[%s5 + $0x18] sm:$0xff] %vm668, 0.0
        %689 = vst.msk [vmem:[%s5 + $0x20] sm:$0xff] %vm668, 0.0
        %690 = vst.msk [vmem:[%s5 + $0x28] sm:$0xff] %vm668, 0.0
        %691 = vst.msk [vmem:[%s5 + $0x30] sm:$0xff] %vm668, 0.0
        %692 = vst.msk [vmem:[%s5 + $0x38] sm:$0xff] %vm668, 0.0
        %693 = vst.msk [vmem:[%s5 + $0x40] sm:$0xff] %vm668, 0.0
        %694 = vst.msk [vmem:[%s5 + $0x48] sm:$0xff] %vm668, 0.0
        %695 = vst.msk [vmem:[%s5 + $0x50] sm:$0xff] %vm668, 0.0
        %696 = vst.msk [vmem:[%s5 + $0x58] sm:$0xff] %vm668, 0.0
        %697 = vst.msk [vmem:[%s5 + $0x60] sm:$0xff] %vm668, 0.0
        %698 = vst.msk [vmem:[%s5 + $0x68] sm:$0xff] %vm668, 0.0
        %699 = vst.msk [vmem:[%s5 + $0x70] sm:$0xff] %vm668, 0.0
        %700 = vst.msk [vmem:[%s5 + $0x78] sm:$0xff] %vm668, 0.0
      $region40: #{tpu_custom_call.1} parent=35 // pred_fallthru
        _
      %v701 = vld [vmem:[%s4] sm:$0xff]
      %v702 = vld [vmem:[%s4 + $0x8] sm:$0xff]
      %v703 = vld [vmem:[%s4 + $0x10] sm:$0xff]
      %v704 = vld [vmem:[%s4 + $0x18] sm:$0xff]
      %v705 = vld [vmem:[%s4 + $0x20] sm:$0xff]
      %v706 = vld [vmem:[%s4 + $0x28] sm:$0xff]
      %v707 = vld [vmem:[%s4 + $0x30] sm:$0xff]
      %v708 = vld [vmem:[%s4 + $0x38] sm:$0xff]
      %v709 = vld [vmem:[%s4 + $0x40] sm:$0xff]
      %v710 = vld [vmem:[%s4 + $0x48] sm:$0xff]
      %v711 = vld [vmem:[%s4 + $0x50] sm:$0xff]
      %v712 = vld [vmem:[%s4 + $0x58] sm:$0xff]
      %v713 = vld [vmem:[%s4 + $0x60] sm:$0xff]
      %v714 = vld [vmem:[%s4 + $0x68] sm:$0xff]
      %v715 = vld [vmem:[%s4 + $0x70] sm:$0xff]
      %v716 = vld [vmem:[%s4 + $0x78] sm:$0xff]
      %v717 = vadd.f32 %v584, %v586
      %718 = vadd.xlane.f32.xlu0 %v717
      %v719 = vpop.xlane.xlu0 %718
      %v720 = vadd.f32 %v588, %v590
      %721 = vadd.xlane.f32.xlu0 %v720
      %v722 = vpop.xlane.xlu0 %721
      %v723 = vadd.f32 %v594, %v596
      %724 = vadd.xlane.f32.xlu0 %v723
      %v725 = vpop.xlane.xlu0 %724
      %v726 = vadd.f32 %v598, %v600
      %727 = vadd.xlane.f32.xlu0 %v726
      %v728 = vpop.xlane.xlu0 %727
      %v729 = vadd.f32 %v604, %v606
      %730 = vadd.xlane.f32.xlu0 %v729
      %v731 = vpop.xlane.xlu0 %730
      %v732 = vadd.f32 %v608, %v610
      %733 = vadd.xlane.f32.xlu0 %v732
      %v734 = vpop.xlane.xlu0 %733
      %v735 = vadd.f32 %v614, %v616
      %736 = vadd.xlane.f32.xlu0 %v735
      %v737 = vpop.xlane.xlu0 %736
      %v738 = vadd.f32 %v618, %v620
      %739 = vadd.xlane.f32.xlu0 %v738
      %v740 = vpop.xlane.xlu0 %739
      %v741 = vadd.f32 %v624, %v626
      %742 = vadd.xlane.f32.xlu0 %v741
      %v743 = vpop.xlane.xlu0 %742
      %v744 = vadd.f32 %v628, %v630
      %745 = vadd.xlane.f32.xlu0 %v744
      %v746 = vpop.xlane.xlu0 %745
      %v747 = vadd.f32 %v634, %v636
      %748 = vadd.xlane.f32.xlu0 %v747
      %v749 = vpop.xlane.xlu0 %748
      %v750 = vadd.f32 %v638, %v640
      %751 = vadd.xlane.f32.xlu0 %v750
      %v752 = vpop.xlane.xlu0 %751
      %v753 = vadd.f32 %v644, %v646
      %754 = vadd.xlane.f32.xlu0 %v753
      %v755 = vpop.xlane.xlu0 %754
      %v756 = vadd.f32 %v648, %v650
      %757 = vadd.xlane.f32.xlu0 %v756
      %v758 = vpop.xlane.xlu0 %757
      %v759 = vadd.f32 %v654, %v656
      %760 = vadd.xlane.f32.xlu0 %v759
      %v761 = vpop.xlane.xlu0 %760
      %v762 = vadd.f32 %v658, %v660
      %763 = vadd.xlane.f32.xlu0 %v762
      %v764 = vpop.xlane.xlu0 %763
      %v765 = vadd.f32 %v701, %v719
      %v766 = vadd.f32 %v702, %v722
      %v767 = vadd.f32 %v703, %v725
      %v768 = vadd.f32 %v704, %v728
      %v769 = vadd.f32 %v705, %v731
      %v770 = vadd.f32 %v706, %v734
      %v771 = vadd.f32 %v707, %v737
      %v772 = vadd.f32 %v708, %v740
      %v773 = vadd.f32 %v709, %v743
      %v774 = vadd.f32 %v710, %v746
      %v775 = vadd.f32 %v711, %v749
      %v776 = vadd.f32 %v712, %v752
      %v777 = vadd.f32 %v713, %v755
      %v778 = vadd.f32 %v714, %v758
      %v779 = vadd.f32 %v715, %v761
      %v780 = vadd.f32 %v716, %v764
      %vm781 = vcmask 7168
      %782 = vst.msk [vmem:[%s4] sm:$0xff] %vm781, %v765
      %783 = vst.msk [vmem:[%s4 + $0x8] sm:$0xff] %vm781, %v766
      %784 = vst.msk [vmem:[%s4 + $0x10] sm:$0xff] %vm781, %v767
      %785 = vst.msk [vmem:[%s4 + $0x18] sm:$0xff] %vm781, %v768
      %786 = vst.msk [vmem:[%s4 + $0x20] sm:$0xff] %vm781, %v769
      %787 = vst.msk [vmem:[%s4 + $0x28] sm:$0xff] %vm781, %v770
      %788 = vst.msk [vmem:[%s4 + $0x30] sm:$0xff] %vm781, %v771
      %789 = vst.msk [vmem:[%s4 + $0x38] sm:$0xff] %vm781, %v772
      %790 = vst.msk [vmem:[%s4 + $0x40] sm:$0xff] %vm781, %v773
      %791 = vst.msk [vmem:[%s4 + $0x48] sm:$0xff] %vm781, %v774
      %792 = vst.msk [vmem:[%s4 + $0x50] sm:$0xff] %vm781, %v775
      %793 = vst.msk [vmem:[%s4 + $0x58] sm:$0xff] %vm781, %v776
      %794 = vst.msk [vmem:[%s4 + $0x60] sm:$0xff] %vm781, %v777
      %795 = vst.msk [vmem:[%s4 + $0x68] sm:$0xff] %vm781, %v778
      %796 = vst.msk [vmem:[%s4 + $0x70] sm:$0xff] %vm781, %v779
      %797 = vst.msk [vmem:[%s4 + $0x78] sm:$0xff] %vm781, %v780
      %v798 = vld [vmem:[%s5] sm:$0xff]
      %v799 = vld [vmem:[%s5 + $0x8] sm:$0xff]
      %v800 = vld [vmem:[%s5 + $0x10] sm:$0xff]
      %v801 = vld [vmem:[%s5 + $0x18] sm:$0xff]
      %v802 = vld [vmem:[%s5 + $0x20] sm:$0xff]
      %v803 = vld [vmem:[%s5 + $0x28] sm:$0xff]
      %v804 = vld [vmem:[%s5 + $0x30] sm:$0xff]
      %v805 = vld [vmem:[%s5 + $0x38] sm:$0xff]
      %v806 = vld [vmem:[%s5 + $0x40] sm:$0xff]
      %v807 = vld [vmem:[%s5 + $0x48] sm:$0xff]
      %v808 = vld [vmem:[%s5 + $0x50] sm:$0xff]
      %v809 = vld [vmem:[%s5 + $0x58] sm:$0xff]
      %v810 = vld [vmem:[%s5 + $0x60] sm:$0xff]
      %v811 = vld [vmem:[%s5 + $0x68] sm:$0xff]
      %v812 = vld [vmem:[%s5 + $0x70] sm:$0xff]
      %v813 = vld [vmem:[%s5 + $0x78] sm:$0xff]
      %v814 = vmul.f32 %v584, %v584
      %v815 = vmul.f32 %v586, %v586
      %v816 = vmul.f32 %v588, %v588
      %v817 = vmul.f32 %v590, %v590
      %v818 = vmul.f32 %v594, %v594
      %v819 = vmul.f32 %v596, %v596
      %v820 = vmul.f32 %v598, %v598
      %v821 = vmul.f32 %v600, %v600
      %v822 = vmul.f32 %v604, %v604
      %v823 = vmul.f32 %v606, %v606
      %v824 = vmul.f32 %v608, %v608
      %v825 = vmul.f32 %v610, %v610
      %v826 = vmul.f32 %v614, %v614
      %v827 = vmul.f32 %v616, %v616
      %v828 = vmul.f32 %v618, %v618
      %v829 = vmul.f32 %v620, %v620
      %v830 = vmul.f32 %v624, %v624
      %v831 = vmul.f32 %v626, %v626
      %v832 = vmul.f32 %v628, %v628
      %v833 = vmul.f32 %v630, %v630
      %v834 = vmul.f32 %v634, %v634
      %v835 = vmul.f32 %v636, %v636
      %v836 = vmul.f32 %v638, %v638
      %v837 = vmul.f32 %v640, %v640
      %v838 = vmul.f32 %v644, %v644
      %v839 = vmul.f32 %v646, %v646
      %v840 = vmul.f32 %v648, %v648
      %v841 = vmul.f32 %v650, %v650
      %v842 = vmul.f32 %v654, %v654
      %v843 = vmul.f32 %v656, %v656
      %v844 = vmul.f32 %v658, %v658
      %v845 = vmul.f32 %v660, %v660
      %v846 = vadd.f32 %v814, %v815
      %847 = vadd.xlane.f32.xlu0 %v846
      %v848 = vpop.xlane.xlu0 %847
      %v849 = vadd.f32 %v816, %v817
      %850 = vadd.xlane.f32.xlu0 %v849
      %v851 = vpop.xlane.xlu0 %850
      %v852 = vadd.f32 %v818, %v819
      %853 = vadd.xlane.f32.xlu0 %v852
      %v854 = vpop.xlane.xlu0 %853
      %v855 = vadd.f32 %v820, %v821
      %856 = vadd.xlane.f32.xlu0 %v855
      %v857 = vpop.xlane.xlu0 %856
      %v858 = vadd.f32 %v822, %v823
      %859 = vadd.xlane.f32.xlu0 %v858
      %v860 = vpop.xlane.xlu0 %859
      %v861 = vadd.f32 %v824, %v825
      %862 = vadd.xlane.f32.xlu0 %v861
      %v863 = vpop.xlane.xlu0 %862
      %v864 = vadd.f32 %v826, %v827
      %865 = vadd.xlane.f32.xlu0 %v864
      %v866 = vpop.xlane.xlu0 %865
      %v867 = vadd.f32 %v828, %v829
      %868 = vadd.xlane.f32.xlu0 %v867
      %v869 = vpop.xlane.xlu0 %868
      %v870 = vadd.f32 %v830, %v831
      %871 = vadd.xlane.f32.xlu0 %v870
      %v872 = vpop.xlane.xlu0 %871
      %v873 = vadd.f32 %v832, %v833
      %874 = vadd.xlane.f32.xlu0 %v873
      %v875 = vpop.xlane.xlu0 %874
      %v876 = vadd.f32 %v834, %v835
      %877 = vadd.xlane.f32.xlu0 %v876
      %v878 = vpop.xlane.xlu0 %877
      %v879 = vadd.f32 %v836, %v837
      %880 = vadd.xlane.f32.xlu0 %v879
      %v881 = vpop.xlane.xlu0 %880
      %v882 = vadd.f32 %v838, %v839
      %883 = vadd.xlane.f32.xlu0 %v882
      %v884 = vpop.xlane.xlu0 %883
      %v885 = vadd.f32 %v840, %v841
      %886 = vadd.xlane.f32.xlu0 %v885
      %v887 = vpop.xlane.xlu0 %886
      %v888 = vadd.f32 %v842, %v843
      %889 = vadd.xlane.f32.xlu0 %v888
      %v890 = vpop.xlane.xlu0 %889
      %v891 = vadd.f32 %v844, %v845
      %892 = vadd.xlane.f32.xlu0 %v891
      %v893 = vpop.xlane.xlu0 %892
      %v894 = vadd.f32 %v798, %v848
      %v895 = vadd.f32 %v799, %v851
      %v896 = vadd.f32 %v800, %v854
      %v897 = vadd.f32 %v801, %v857
      %v898 = vadd.f32 %v802, %v860
      %v899 = vadd.f32 %v803, %v863
      %v900 = vadd.f32 %v804, %v866
      %v901 = vadd.f32 %v805, %v869
      %v902 = vadd.f32 %v806, %v872
      %v903 = vadd.f32 %v807, %v875
      %v904 = vadd.f32 %v808, %v878
      %v905 = vadd.f32 %v809, %v881
      %v906 = vadd.f32 %v810, %v884
      %v907 = vadd.f32 %v811, %v887
      %v908 = vadd.f32 %v812, %v890
      %v909 = vadd.f32 %v813, %v893
      %910 = vst.msk [vmem:[%s5] sm:$0xff] %vm781, %v894
      %911 = vst.msk [vmem:[%s5 + $0x8] sm:$0xff] %vm781, %v895
      %912 = vst.msk [vmem:[%s5 + $0x10] sm:$0xff] %vm781, %v896
      %913 = vst.msk [vmem:[%s5 + $0x18] sm:$0xff] %vm781, %v897
      %914 = vst.msk [vmem:[%s5 + $0x20] sm:$0xff] %vm781, %v898
      %915 = vst.msk [vmem:[%s5 + $0x28] sm:$0xff] %vm781, %v899
      %916 = vst.msk [vmem:[%s5 + $0x30] sm:$0xff] %vm781, %v900
      %917 = vst.msk [vmem:[%s5 + $0x38] sm:$0xff] %vm781, %v901
      %918 = vst.msk [vmem:[%s5 + $0x40] sm:$0xff] %vm781, %v902
      %919 = vst.msk [vmem:[%s5 + $0x48] sm:$0xff] %vm781, %v903
      %920 = vst.msk [vmem:[%s5 + $0x50] sm:$0xff] %vm781, %v904
      %921 = vst.msk [vmem:[%s5 + $0x58] sm:$0xff] %vm781, %v905
      %922 = vst.msk [vmem:[%s5 + $0x60] sm:$0xff] %vm781, %v906
      %923 = vst.msk [vmem:[%s5 + $0x68] sm:$0xff] %vm781, %v907
      %924 = vst.msk [vmem:[%s5 + $0x70] sm:$0xff] %vm781, %v908
      %925 = vst.msk [vmem:[%s5 + $0x78] sm:$0xff] %vm781, %v909
      // Predicated region
      $region41: #{tpu_custom_call.1} parent=35 // pred_check
        %p926 = pneg %p133
      $region42: #{tpu_custom_call.1} parent=35 // pred_check_branch
        %928 = sbr.rel (%p926) target = $region44
      $region43: #{tpu_custom_call.1} parent=35 // pred_region
        _
      $region44: #{tpu_custom_call.1} parent=35 // pred_fallthru
        _
      // Predicated region
      $region45: #{tpu_custom_call.1} parent=35 // pred_check
        %p929 = pneg %p154
      $region46: #{tpu_custom_call.1} parent=35 // pred_check_branch
        %931 = sbr.rel (%p929) target = $region48
      $region47: #{tpu_custom_call.1} parent=35 // pred_region
        _
      $region48: #{tpu_custom_call.1} parent=35 // pred_fallthru
        _
      // Predicated region
      $region49: #{tpu_custom_call.1} parent=35 // pred_check
        %p932 = pneg %p133
      $region50: #{tpu_custom_call.1} parent=35 // pred_check_branch
        %934 = sbr.rel (%p932) target = $region52
      $region51: #{tpu_custom_call.1} parent=35 // pred_region
        _
      $region52: #{tpu_custom_call.1} parent=35 // pred_fallthru
        _
      // Predicated region
      $region53: #{tpu_custom_call.1} parent=35 // pred_check
        %p935 = pneg %p154
      $region54: #{tpu_custom_call.1} parent=35 // pred_check_branch
        %937 = sbr.rel (%p935) target = $region56
      $region55: #{tpu_custom_call.1} parent=35 // pred_region
        _
      $region56: #{tpu_custom_call.1} parent=35 // pred_fallthru
        _
    $region36: #{tpu_custom_call.1} parent=5 // pred_fallthru
      _
    %p938 = scmp.le.s32.totalorder 2, %s12
    // Predicated region
    $region57: #{tpu_custom_call.1} parent=5 // pred_check
      %p939 = pneg %p938
    $region58: #{tpu_custom_call.1} parent=5 // pred_check_branch
      %941 = sbr.rel (%p939) target = $region60
    $region59: #{tpu_custom_call.1} parent=5 // pred_region
      %s942 = ssub.s32 %s12, 2
    $region60: #{tpu_custom_call.1} parent=5 // pred_fallthru
      _
  $region6: #{tpu_custom_call.1} parent=0 // loop_footer
    %s16 = sadd.s32 1, %s12
  $region7: #{tpu_custom_call.1} parent=0 // loop_footer_branch
    %11 = sbr.rel target = $region3
  $region8: #{tpu_custom_call.1} parent=0 // loop_exit
    _

</llo_original>
